<compile_context>
chip_gen: v7x
topology: tpu7x:2x2x1
jax: 0.10.0
libtpu: 0.0.40
codegen_flags: <defaults>
</compile_context>

<pallas_src>
import jax
import jax.numpy as jnp
from jax.experimental import pallas as pl
from jax.experimental.pallas import tpu as pltpu


def _round_up(x, m):
    return ((x + m - 1) // m) * m


def _global_attention_kernel(q_ref, ctx_ref, addmask_ref,
                             w1_ref, wca_ref, w2bt_ref, bf_ref, out_ref):
    # Per-grid-step views:
    #   q_ref       : (TB, Q)      f32
    #   ctx_ref     : (TB, Lp, K)  f32 or bf16 (stream dtype)
    #   addmask_ref : (TB, Lp)     f32  (0 keep, -1e18 masked, -inf L-padding)
    #   w1_ref      : (Q, K)       f32  semtrans weight, original layout
    #   wca_ref     : (K, Q)       f32  W1^T @ W2a^T (fused weighted-ctx proj)
    #   w2bt_ref    : (Q, Q)       f32  W2b^T (acts on the query)
    #   bf_ref      : (1, Q)       f32  b1 @ W2a^T + b2 (fused bias)
    #   out_ref     : (TB, Q)      f32
    q = q_ref[...]                                          # (TB, Q)
    ctx = ctx_ref[...].astype(jnp.float32)                  # (TB, Lp, K)

    # p[b,k] = sum_q query[b,q] * W1[q,k]   (tiny MXU matmul, f32 accumulate)
    p = jnp.dot(q, w1_ref[...], preferred_element_type=jnp.float32)   # (TB, K)

    # scores[b,l] = sum_k ctx[b,l,k] * p[b,k]   (+ additive mask)
    # (the constant query.b1 term is softmax-invariant and dropped)
    scores = jnp.sum(ctx * p[:, None, :], axis=-1)          # (TB, Lp)
    scores = scores + addmask_ref[...]

    # Softmax along L; approximate reciprocal runs on the EUP slot.
    m = jnp.max(scores, axis=-1, keepdims=True)
    e = jnp.exp(scores - m)
    denom = jnp.sum(e, axis=-1, keepdims=True)
    w = e * pl.reciprocal(denom, approx=True)               # (TB, Lp)

    # Weighted context in *input* space; since sum_l w = 1, the semtrans
    # projection commutes with the weighted sum (applied via the fused wca).
    ctxw = jnp.sum(w[:, :, None] * ctx, axis=1)             # (TB, K)

    # sembacks(concat([weighted_context, query])) with W1^T/b1 folded in.
    out = (jnp.dot(ctxw, wca_ref[...], preferred_element_type=jnp.float32)
           + jnp.dot(q, w2bt_ref[...], preferred_element_type=jnp.float32)
           + bf_ref[...])
    out_ref[...] = jnp.tanh(out)


def _padded_bytes(shape, itemsize):
    """Approximate VMEM footprint of a tile incl. (sublane, 128-lane) padding."""
    if not shape:
        return itemsize
    sub = 8 * max(1, 4 // itemsize)              # 8 sublanes for f32, 16 for bf16
    if len(shape) == 1:
        return _round_up(shape[0], 128) * itemsize
    lanes = _round_up(shape[-1], 128)
    rows = _round_up(shape[-2], sub)
    lead = 1
    for d in shape[:-2]:
        lead *= int(d)
    return lead * rows * lanes * itemsize


def _vmem_budget():
    """Generation-aware (VMEM-capacity-aware) limit + per-step tile budget."""
    cap = 128 * 1024 * 1024
    try:
        info_cap = int(pltpu.get_tpu_info().vmem_capacity_bytes)
        if info_cap > 0:
            cap = info_cap
    except Exception:
        pass
    # v5e/v6e (128 MiB) -> 96 MiB limit; v7x (64 MiB) -> 48 MiB limit.
    limit = min((cap * 3) // 4, 96 * 1024 * 1024)
    budget = limit // 2          # headroom for weights, compiler scratch, spills
    return limit, budget


def _choose_tb(B, Lp, K, Q, ctx_itemsize, budget):
    """Batch-tile size: multiple of 8, VMEM-budgeted with (8,128) padding, and
    capped so the grid keeps >=2 (ideally >=4) steps when B allows it (keeps
    the software pipeline alive and lets v7x shard the grid over both TCs)."""

    def step_bytes(t):
        dbuf = 2 * (_padded_bytes((t, Lp, K), ctx_itemsize)   # context (double buf)
                    + _padded_bytes((t, Lp), 4)               # additive mask
                    + 2 * _padded_bytes((t, Q), 4))           # query + output
        live = (_padded_bytes((t, Lp, K), 4)                  # f32 ctx copy/products
                + 4 * _padded_bytes((t, Lp), 4)               # scores / e / w
                + 4 * _padded_bytes((t, K), 4))               # p / ctxw / out temps
        return dbuf + live

    tb = min(_round_up(max(B, 1), 8), 256)
    while tb > 8 and step_bytes(tb) > budget:
        tb = max(8, _round_up(tb // 2, 8))
    if B > 8:
        steps = 4 if B >= 32 else 2
        tb = min(tb, max(8, _round_up(-(-B // steps), 8)))
    return tb


def global_attention(query, context, mask_f, w1, b1, w2, b2,
                     stream_dtype=jnp.bfloat16):
    """Pallas implementation of GlobalAttention.forward.

    query:   (B, Q) f32
    context: (B, L, K) f32
    mask_f:  (B, L) f32 (1.0 = masked)
    w1: (Q, K), b1: (Q,), w2: (Q, 2Q), b2: (Q,)
    stream_dtype: dtype context is streamed to the kernel in (bf16 halves HBM
                  traffic for this HBM-bound kernel; accumulation stays f32).
    returns (B, Q) f32  (matches torch .squeeze() for B>1, Q>1)
    """
    query = jnp.asarray(query, jnp.float32)
    context = jnp.asarray(context, jnp.float32)
    mask_f = jnp.asarray(mask_f, jnp.float32)
    w1 = jnp.asarray(w1, jnp.float32)
    b1 = jnp.asarray(b1, jnp.float32)
    w2 = jnp.asarray(w2, jnp.float32)
    b2 = jnp.asarray(b2, jnp.float32)

    B, Q = query.shape
    _, L, K = context.shape
    hp = jax.lax.Precision.HIGHEST

    # Host-side one-time weight fusion:
    #   out = tanh(wc @ W2a^T + q @ W2b^T + b2),  wc = ctxw @ W1^T + b1
    #       = tanh(ctxw @ (W1^T @ W2a^T) + q @ W2b^T + (b1 @ W2a^T + b2))
    w2a_t = w2[:, :Q].T                                       # (Q, Q)
    w2b_t = w2[:, Q:].T                                       # (Q, Q)
    wca = jnp.einsum('qk,qo->ko', w1, w2a_t, precision=hp)    # (K, Q)
    bf = (jnp.einsum('q,qo->o', b1, w2a_t, precision=hp) + b2).reshape(1, Q)

    # Additive mask: 0 keep, -1e18 masked (same value as the reference fill).
    add_mask = mask_f * jnp.float32(-1e18)

    # Pad L to a sublane multiple; padded positions get -inf so they carry
    # exactly zero softmax weight even in the all-masked degenerate row case.
    Lp = _round_up(L, 8)
    ctx_p = context
    if Lp != L:
        ctx_p = jnp.pad(ctx_p, ((0, 0), (0, Lp - L), (0, 0)))
        add_mask = jnp.pad(add_mask, ((0, 0), (0, Lp - L)),
                           constant_values=-jnp.inf)

    stream_dtype = jnp.dtype(stream_dtype)
    vmem_limit, budget = _vmem_budget()
    tb = _choose_tb(B, Lp, K, Q, stream_dtype.itemsize, budget)

    # Pad batch to a multiple of the tile; padded rows are inert and sliced off.
    Bp = _round_up(B, tb)
    q_p = query
    if Bp != B:
        pad = Bp - B
        q_p = jnp.pad(q_p, ((0, pad), (0, 0)))
        ctx_p = jnp.pad(ctx_p, ((0, pad), (0, 0), (0, 0)))
        add_mask = jnp.pad(add_mask, ((0, pad), (0, 0)))

    ctx_p = ctx_p.astype(stream_dtype)   # halve HBM->VMEM bytes on the big stream

    grid = (Bp // tb,)

    # TODO(synk): if a profile shows exposed context DMA after this rewrite,
    # add pipeline_mode=pl.Buffered(3) on the context BlockSpec only.
    # TODO(synk): a single batch row with huge L*K exceeding VMEM would need an
    # online-softmax L-chunked variant; not required at these shapes.
    out = pl.pallas_call(
        _global_attention_kernel,
        out_shape=jax.ShapeDtypeStruct((Bp, Q), jnp.float32),
        grid_spec=pltpu.PrefetchScalarGridSpec(
            num_scalar_prefetch=0,
            grid=grid,
            in_specs=[
                pl.BlockSpec((tb, Q), lambda b: (b, 0)),          # query
                pl.BlockSpec((tb, Lp, K), lambda b: (b, 0, 0)),   # context
                pl.BlockSpec((tb, Lp), lambda b: (b, 0)),         # additive mask
                pl.BlockSpec((Q, K), lambda b: (0, 0)),           # W1
                pl.BlockSpec((K, Q), lambda b: (0, 0)),           # W1^T @ W2a^T
                pl.BlockSpec((Q, Q), lambda b: (0, 0)),           # W2b^T
                pl.BlockSpec((1, Q), lambda b: (0, 0)),           # fused bias
            ],
            out_specs=pl.BlockSpec((tb, Q), lambda b: (b, 0)),
        ),
        compiler_params=pltpu.CompilerParams(
            dimension_semantics=("parallel",),
            vmem_limit_bytes=int(vmem_limit),
        ),
    )(q_p, ctx_p, add_mask, w1, wca, w2b_t, bf)

    return out[:B]


def _reference(query, context, mask_bool, w1, b1, w2, b2):
    """Pure-JAX reference mirroring the PyTorch forward (high-precision dots)."""
    hp = jax.lax.Precision.HIGHEST
    new_query = query[:, None, :]                                        # (B,1,Q)
    affine = jnp.einsum('blk,qk->blq', context, w1, precision=hp) + b1   # (B,L,Q)
    weight = jnp.einsum('biq,blq->bil', new_query, affine, precision=hp)
    weight = jnp.where(mask_bool[:, None, :], jnp.float32(-1e18), weight)
    weight = jax.nn.softmax(weight, axis=2)
    wc = jnp.einsum('bil,blq->biq', weight, affine, precision=hp)        # (B,1,Q)
    cat = jnp.concatenate([wc, new_query], axis=2)                       # (B,1,2Q)
    out = jnp.tanh(jnp.einsum('bic,oc->bio', cat, w2, precision=hp) + b2)
    return out[:, 0, :]                                                  # squeeze


def _make_inputs(key, B, L, ksize, qsize):
    k_q, k_c, k_m, k_w1, k_b1, k_w2, k_b2 = jax.random.split(key, 7)
    query = jax.random.normal(k_q, (B, qsize), dtype=jnp.float32)
    context = jax.random.normal(k_c, (B, L, ksize), dtype=jnp.float32)
    mask_bool = jax.random.uniform(k_m, (B, L)) < 0.3          # True = masked
    w1 = jax.random.uniform(k_w1, (qsize, ksize), jnp.float32,
                            -1.0, 1.0) / jnp.sqrt(ksize)
    b1 = jax.random.uniform(k_b1, (qsize,), jnp.float32,
                            -1.0, 1.0) / jnp.sqrt(ksize)
    w2 = jax.random.uniform(k_w2, (qsize, 2 * qsize), jnp.float32,
                            -1.0, 1.0) / jnp.sqrt(2 * qsize)
    b2 = jax.random.uniform(k_b2, (qsize,), jnp.float32,
                            -1.0, 1.0) / jnp.sqrt(2 * qsize)
    return query, context, mask_bool, w1, b1, w2, b2


if __name__ == "__main__":
    key = jax.random.PRNGKey(0)
    k1, k2 = jax.random.split(key)

    # Case 1: the module's natural small shapes (B=2, L=8, K=Q=32).
    q, ctx, mask_bool, w1, b1, w2, b2 = _make_inputs(k1, 2, 8, 32, 32)
    mask_f = mask_bool.astype(jnp.float32)

    ref = _reference(q, ctx, mask_bool, w1, b1, w2, b2)
    ref_bf = _reference(q, ctx.astype(jnp.bfloat16).astype(jnp.float32),
                        mask_bool, w1, b1, w2, b2)

    out_f32 = jax.block_until_ready(
        global_attention(q, ctx, mask_f, w1, b1, w2, b2,
                         stream_dtype=jnp.float32))
    out_bf16 = jax.block_until_ready(
        global_attention(q, ctx, mask_f, w1, b1, w2, b2,
                         stream_dtype=jnp.bfloat16))

    assert out_f32.shape == (2, 32)
    assert jnp.allclose(out_f32, ref, atol=5e-3, rtol=5e-3), \
        f"f32 max err {float(jnp.max(jnp.abs(out_f32 - ref)))}"
    assert jnp.allclose(out_bf16, ref_bf, atol=5e-3, rtol=5e-3), \
        f"bf16 max err {float(jnp.max(jnp.abs(out_bf16 - ref_bf)))}"
    assert jnp.allclose(out_bf16, ref, atol=6e-2, rtol=6e-2), \
        f"bf16-vs-f32 max err {float(jnp.max(jnp.abs(out_bf16 - ref)))}"

    # Case 2: unaligned shapes exercising the L- and batch-padding paths.
    q2, ctx2, mask_bool2, w12, b12, w22, b22 = _make_inputs(k2, 5, 7, 24, 16)
    mask_f2 = mask_bool2.astype(jnp.float32)
    ref2_bf = _reference(q2, ctx2.astype(jnp.bfloat16).astype(jnp.float32),
                         mask_bool2, w12, b12, w22, b22)
    out2 = jax.block_until_ready(
        global_attention(q2, ctx2, mask_f2, w12, b12, w22, b22))
    assert out2.shape == (5, 16)
    assert jnp.allclose(out2, ref2_bf, atol=5e-3, rtol=5e-3), \
        f"padded-case max err {float(jnp.max(jnp.abs(out2 - ref2_bf)))}"

    print("KERNEL_OK")
</pallas_src>

<mosaic_0001>
module attributes {stable_mosaic.version = 11 : i64} {
  func.func @_global_attention_kernel(%arg0: i32, %arg1: memref<8x32xf32, #tpu.memory_space<vmem>>, %arg2: memref<8x8x32xf32, #tpu.memory_space<vmem>>, %arg3: memref<8x8xf32, #tpu.memory_space<vmem>>, %arg4: memref<32x32xf32, #tpu.memory_space<vmem>>, %arg5: memref<32x32xf32, #tpu.memory_space<vmem>>, %arg6: memref<32x32xf32, #tpu.memory_space<vmem>>, %arg7: memref<1x32xf32, #tpu.memory_space<vmem>>, %arg8: memref<8x32xf32, #tpu.memory_space<vmem>>) attributes {dimension_semantics = [#tpu.dimension_semantics<parallel>], iteration_bounds = array<i64: 1>, scalar_prefetch = 0 : i64, scratch_operands = 0 : i64, tpu.core_type = #tpu.core_type<tc>, window_params = [{transform_indices = @transform_0, window_bounds = array<i64: 8, 32>}, {transform_indices = @transform_1, window_bounds = array<i64: 8, 8, 32>}, {transform_indices = @transform_2, window_bounds = array<i64: 8, 8>}, {pipeline_mode = #tpu.pipeline_mode<synchronous>, transform_indices = @transform_3, window_bounds = array<i64: 32, 32>}, {pipeline_mode = #tpu.pipeline_mode<synchronous>, transform_indices = @transform_4, window_bounds = array<i64: 32, 32>}, {pipeline_mode = #tpu.pipeline_mode<synchronous>, transform_indices = @transform_5, window_bounds = array<i64: 32, 32>}, {pipeline_mode = #tpu.pipeline_mode<synchronous>, transform_indices = @transform_6, window_bounds = array<i64: 1, 32>}, {transform_indices = @transform_7, window_bounds = array<i64: 8, 32>}]} {
    %c0 = arith.constant 0 : index
    %c0_0 = arith.constant 0 : index
    %0 = vector.load %arg1[%c0, %c0_0] : memref<8x32xf32, #tpu.memory_space<vmem>>, vector<8x32xf32>
    %c0_1 = arith.constant 0 : index
    %c0_2 = arith.constant 0 : index
    %c0_3 = arith.constant 0 : index
    %1 = vector.load %arg2[%c0_1, %c0_2, %c0_3] : memref<8x8x32xf32, #tpu.memory_space<vmem>>, vector<8x8x32xf32>
    %c0_4 = arith.constant 0 : index
    %c0_5 = arith.constant 0 : index
    %2 = vector.load %arg4[%c0_4, %c0_5] : memref<32x32xf32, #tpu.memory_space<vmem>>, vector<32x32xf32>
    %cst = arith.constant dense<0.000000e+00> : vector<8x32xf32>
    %3 = tpu.matmul %0, %2, %cst {dimension_numbers = #tpu.dot_dimension_numbers<[1], [0], [0], [1], [0, 0, 1, 1], [], []>} : vector<8x32xf32>, vector<32x32xf32>, vector<8x32xf32> -> vector<8x32xf32>
    %4 = vector.shape_cast %3 : vector<8x32xf32> to vector<8x1x32xf32>
    %5 = vector.broadcast %4 : vector<8x1x32xf32> to vector<8x8x32xf32>
    %6 = arith.mulf %1, %5 : vector<8x8x32xf32>
    %cst_6 = arith.constant dense<0.000000e+00> : vector<8x8xf32>
    %7 = vector.multi_reduction <add>, %6, %cst_6 [2] : vector<8x8x32xf32> to vector<8x8xf32>
    %c0_7 = arith.constant 0 : index
    %c0_8 = arith.constant 0 : index
    %8 = vector.load %arg3[%c0_7, %c0_8] : memref<8x8xf32, #tpu.memory_space<vmem>>, vector<8x8xf32>
    %9 = arith.addf %7, %8 : vector<8x8xf32>
    %cst_9 = arith.constant dense<0xFF800000> : vector<8xf32>
    %10 = vector.multi_reduction <maximumf>, %9, %cst_9 [1] : vector<8x8xf32> to vector<8xf32>
    %11 = vector.shape_cast %10 : vector<8xf32> to vector<8x1xf32>
    %12 = vector.broadcast %11 : vector<8x1xf32> to vector<8x8xf32>
    %13 = arith.subf %9, %12 : vector<8x8xf32>
    %14 = math.exp %13 : vector<8x8xf32>
    %cst_10 = arith.constant dense<0.000000e+00> : vector<8xf32>
    %15 = vector.multi_reduction <add>, %14, %cst_10 [1] : vector<8x8xf32> to vector<8xf32>
    %16 = vector.shape_cast %15 : vector<8xf32> to vector<8x1xf32>
    %17 = tpu.reciprocal %16 {approx = true} : vector<8x1xf32> -> vector<8x1xf32>
    %18 = vector.broadcast %17 : vector<8x1xf32> to vector<8x8xf32>
    %19 = arith.mulf %14, %18 : vector<8x8xf32>
    %20 = vector.shape_cast %19 : vector<8x8xf32> to vector<8x8x1xf32>
    %21 = vector.broadcast %20 : vector<8x8x1xf32> to vector<8x8x32xf32>
    %22 = arith.mulf %21, %1 : vector<8x8x32xf32>
    %cst_11 = arith.constant dense<0.000000e+00> : vector<8x32xf32>
    %23 = vector.multi_reduction <add>, %22, %cst_11 [1] : vector<8x8x32xf32> to vector<8x32xf32>
    %c0_12 = arith.constant 0 : index
    %c0_13 = arith.constant 0 : index
    %24 = vector.load %arg5[%c0_12, %c0_13] : memref<32x32xf32, #tpu.memory_space<vmem>>, vector<32x32xf32>
    %cst_14 = arith.constant dense<0.000000e+00> : vector<8x32xf32>
    %25 = tpu.matmul %23, %24, %cst_14 {dimension_numbers = #tpu.dot_dimension_numbers<[1], [0], [0], [1], [0, 0, 1, 1], [], []>} : vector<8x32xf32>, vector<32x32xf32>, vector<8x32xf32> -> vector<8x32xf32>
    %c0_15 = arith.constant 0 : index
    %c0_16 = arith.constant 0 : index
    %26 = vector.load %arg6[%c0_15, %c0_16] : memref<32x32xf32, #tpu.memory_space<vmem>>, vector<32x32xf32>
    %cst_17 = arith.constant dense<0.000000e+00> : vector<8x32xf32>
    %27 = tpu.matmul %0, %26, %cst_17 {dimension_numbers = #tpu.dot_dimension_numbers<[1], [0], [0], [1], [0, 0, 1, 1], [], []>} : vector<8x32xf32>, vector<32x32xf32>, vector<8x32xf32> -> vector<8x32xf32>
    %28 = arith.addf %25, %27 : vector<8x32xf32>
    %c0_18 = arith.constant 0 : index
    %c0_19 = arith.constant 0 : index
    %29 = vector.load %arg7[%c0_18, %c0_19] : memref<1x32xf32, #tpu.memory_space<vmem>>, vector<1x32xf32>
    %30 = vector.broadcast %29 : vector<1x32xf32> to vector<8x32xf32>
    %31 = arith.addf %28, %30 : vector<8x32xf32>
    %32 = math.tanh %31 : vector<8x32xf32>
    %c0_20 = arith.constant 0 : index
    %c0_21 = arith.constant 0 : index
    %33 = vector.load %arg8[%c0_20, %c0_21] : memref<8x32xf32, #tpu.memory_space<vmem>>, vector<8x32xf32>
    tpu.vector_store %arg8[%c0_20, %c0_21], %32 {strides = array<i32>} : memref<8x32xf32, #tpu.memory_space<vmem>>, vector<8x32xf32>,
    return
  }
  func.func @transform_0(%arg0: i32) -> (i32, i32) {
    %c0_i32 = arith.constant 0 : i32
    %c0_i32_0 = arith.constant 0 : i32
    return %arg0, %c0_i32 : i32, i32
  }
  func.func @transform_1(%arg0: i32) -> (i32, i32, i32) {
    %c0_i32 = arith.constant 0 : i32
    %c0_i32_0 = arith.constant 0 : i32
    %c0_i32_1 = arith.constant 0 : i32
    return %arg0, %c0_i32, %c0_i32_0 : i32, i32, i32
  }
  func.func @transform_2(%arg0: i32) -> (i32, i32) {
    %c0_i32 = arith.constant 0 : i32
    %c0_i32_0 = arith.constant 0 : i32
    return %arg0, %c0_i32 : i32, i32
  }
  func.func @transform_3(%arg0: i32) -> (i32, i32) {
    %c0_i32 = arith.constant 0 : i32
    %c0_i32_0 = arith.constant 0 : i32
    %c0_i32_1 = arith.constant 0 : i32
    return %c0_i32, %c0_i32_0 : i32, i32
  }
  func.func @transform_4(%arg0: i32) -> (i32, i32) {
    %c0_i32 = arith.constant 0 : i32
    %c0_i32_0 = arith.constant 0 : i32
    %c0_i32_1 = arith.constant 0 : i32
    return %c0_i32, %c0_i32_0 : i32, i32
  }
  func.func @transform_5(%arg0: i32) -> (i32, i32) {
    %c0_i32 = arith.constant 0 : i32
    %c0_i32_0 = arith.constant 0 : i32
    %c0_i32_1 = arith.constant 0 : i32
    return %c0_i32, %c0_i32_0 : i32, i32
  }
  func.func @transform_6(%arg0: i32) -> (i32, i32) {
    %c0_i32 = arith.constant 0 : i32
    %c0_i32_0 = arith.constant 0 : i32
    %c0_i32_1 = arith.constant 0 : i32
    return %c0_i32, %c0_i32_0 : i32, i32
  }
  func.func @transform_7(%arg0: i32) -> (i32, i32) {
    %c0_i32 = arith.constant 0 : i32
    %c0_i32_0 = arith.constant 0 : i32
    return %arg0, %c0_i32 : i32, i32
  }
}

</mosaic_0001>

<llo_original>
// kernel: tpu_custom_call.1
$region0: #{tpu_custom_call.1}
  #allocation0 [shape = 'u32[]', space=smem, size = 0x4, offset = 0x4, fixed_abs, tag = 'smem constant byte address 0x4 - core index']
  #allocation1 [shape = 'u32[144,128]{1,0:T(1,128)}', space=vmem, size = 0x12000, scoped, tag = 'internal scratch']
  %s0 = inlined_call_operand.hbm [shape: f32[8,32], index: 0, kind: input, shape index: {}]
  %s1 = inlined_call_operand.hbm [shape: f32[8,8,32], index: 1, kind: input, shape index: {}]
  %s2 = inlined_call_operand.hbm [shape: f32[8,8], index: 2, kind: input, shape index: {}]
  %s3 = inlined_call_operand.hbm [shape: f32[32,32], index: 3, kind: input, shape index: {}]
  %s4 = inlined_call_operand.hbm [shape: f32[32,32], index: 4, kind: input, shape index: {}]
  %s5 = inlined_call_operand.hbm [shape: f32[32,32], index: 5, kind: input, shape index: {}]
  %s6 = inlined_call_operand.hbm [shape: f32[1,32], index: 6, kind: input, shape index: {}]
  %s7 = inlined_call_operand.hbm [shape: f32[8,32], index: 7, kind: output, shape index: {}]
  %s8 = sld [smem:[#allocation0]]
  $region66: #{tpu_custom_call.1} parent=0
    _
  %s10 = ssub.s32 1, %s8
  %s11 = scalar_select 0, %s10, %s8
  $region1: #{tpu_custom_call.1} parent=0
    #allocation2 [shape = 'u8[4096]{0}', space=vmem, size = 0x1000, scoped, tag = 'input window, operand 0, single buffered']
    #allocation3 [shape = 's32[1]{0}', space=sflag, size = 0x4, scoped, tag = 'scoped memory for tpu_custom_call.1']
    #allocation4 [shape = 's32[1]{0}', space=sflag, size = 0x4, scoped, tag = 'scoped memory for tpu_custom_call.1']
    #allocation5 [shape = 'u8[32768]{0}', space=vmem, size = 0x8000, scoped, tag = 'input window, operand 1, single buffered']
    #allocation6 [shape = 's32[1]{0}', space=sflag, size = 0x4, scoped, tag = 'scoped memory for tpu_custom_call.1']
    #allocation7 [shape = 'u8[4096]{0}', space=vmem, size = 0x1000, scoped, tag = 'input window, operand 2, single buffered']
    #allocation8 [shape = 'u8[16384]{0}', space=vmem, size = 0x4000, scoped, tag = 'input window, operand 3, single buffered']
    #allocation9 [shape = 's32[1]{0}', space=sflag, size = 0x4, scoped, tag = 'scoped memory for tpu_custom_call.1']
    #allocation10 [shape = 'u8[16384]{0}', space=vmem, size = 0x4000, scoped, tag = 'input window, operand 4, single buffered']
    #allocation11 [shape = 'u8[16384]{0}', space=vmem, size = 0x4000, scoped, tag = 'input window, operand 5, single buffered']
    #allocation12 [shape = 's32[1]{0}', space=sflag, size = 0x4, scoped, tag = 'scoped memory for tpu_custom_call.1']
    #allocation13 [shape = 'u8[512]{0}', space=vmem, size = 0x400, scoped, tag = 'input window, operand 6, single buffered']
    #allocation14 [shape = 'u8[4096]{0}', space=vmem, size = 0x1000, scoped, tag = 'output window, operand 0, single buffered']
    %12 = vsyncpa [#allocation3], 0
    %13 = vsyncpa [#allocation6], 0
    %14 = vsyncpa [#allocation9], 0
    %15 = vsyncpa [#allocation12], 0
    %16 = vsyncpa [#allocation4], 0
    // Predicated region
    $region2: #{tpu_custom_call.1} parent=1 // pred_check
      _
    $region3: #{tpu_custom_call.1} parent=1 // pred_check_branch
      %18 = sbr.rel (0) target = $region5
    $region4: #{tpu_custom_call.1} parent=1 // pred_region
      %s20 = ssub.s32 128, 128
      %21 = vsyncadd [#allocation3], %s20
      %s23 = sshll.u32 [#allocation2], 4
      %s24 = int_to_ptr.vmem [resolvable:$true] %s23
      %26 = dma.hbm_to_vmem [thread:$0]  %s0, 128, %s24, [#allocation3]
    $region5: #{tpu_custom_call.1} parent=1 // pred_fallthru
      _
    // Predicated region
    $region6: #{tpu_custom_call.1} parent=1 // pred_check
      _
    $region7: #{tpu_custom_call.1} parent=1 // pred_check_branch
      %28 = sbr.rel (0) target = $region9
    $region8: #{tpu_custom_call.1} parent=1 // pred_region
      %s30 = ssub.s32 1024, 1024
      %31 = vsyncadd [#allocation6], %s30
      %s32 = sshll.u32 [#allocation5], 4
      %s33 = int_to_ptr.vmem [resolvable:$true] %s32
      %38 = dma.hbm_to_vmem [thread:$0]  %s1, 1024, %s33, [#allocation6], 128, 128, 8
    $region9: #{tpu_custom_call.1} parent=1 // pred_fallthru
      _
    // Predicated region
    $region10: #{tpu_custom_call.1} parent=1 // pred_check
      _
    $region11: #{tpu_custom_call.1} parent=1 // pred_check_branch
      %40 = sbr.rel (0) target = $region13
    $region12: #{tpu_custom_call.1} parent=1 // pred_region
      %s42 = ssub.s32 128, 128
      %43 = vsyncadd [#allocation6], %s42
      %s45 = sshll.u32 [#allocation7], 4
      %s46 = int_to_ptr.vmem [resolvable:$true] %s45
      %48 = dma.hbm_to_vmem [thread:$0]  %s2, 128, %s46, [#allocation6]
    $region13: #{tpu_custom_call.1} parent=1 // pred_fallthru
      _
    // Predicated region
    $region14: #{tpu_custom_call.1} parent=1 // pred_check
      _
    $region15: #{tpu_custom_call.1} parent=1 // pred_check_branch
      %50 = sbr.rel (0) target = $region17
    $region16: #{tpu_custom_call.1} parent=1 // pred_region
      %s52 = ssub.s32 512, 512
      %53 = vsyncadd [#allocation9], %s52
      %s54 = sshll.u32 [#allocation8], 4
      %s55 = int_to_ptr.vmem [resolvable:$true] %s54
      %60 = dma.hbm_to_vmem [thread:$0]  %s3, 512, %s55, [#allocation9], 128, 128, 8
    $region17: #{tpu_custom_call.1} parent=1 // pred_fallthru
      _
    // Predicated region
    $region18: #{tpu_custom_call.1} parent=1 // pred_check
      _
    $region19: #{tpu_custom_call.1} parent=1 // pred_check_branch
      %62 = sbr.rel (0) target = $region21
    $region20: #{tpu_custom_call.1} parent=1 // pred_region
      %s64 = ssub.s32 512, 512
      %65 = vsyncadd [#allocation9], %s64
      %s66 = sshll.u32 [#allocation10], 4
      %s67 = int_to_ptr.vmem [resolvable:$true] %s66
      %72 = dma.hbm_to_vmem [thread:$0]  %s4, 512, %s67, [#allocation9], 128, 128, 8
    $region21: #{tpu_custom_call.1} parent=1 // pred_fallthru
      _
    // Predicated region
    $region22: #{tpu_custom_call.1} parent=1 // pred_check
      _
    $region23: #{tpu_custom_call.1} parent=1 // pred_check_branch
      %74 = sbr.rel (0) target = $region25
    $region24: #{tpu_custom_call.1} parent=1 // pred_region
      %s76 = ssub.s32 512, 512
      %77 = vsyncadd [#allocation12], %s76
      %s78 = sshll.u32 [#allocation11], 4
      %s79 = int_to_ptr.vmem [resolvable:$true] %s78
      %84 = dma.hbm_to_vmem [thread:$0]  %s5, 512, %s79, [#allocation12], 128, 128, 8
    $region25: #{tpu_custom_call.1} parent=1 // pred_fallthru
      _
    // Predicated region
    $region26: #{tpu_custom_call.1} parent=1 // pred_check
      _
    $region27: #{tpu_custom_call.1} parent=1 // pred_check_branch
      %86 = sbr.rel (0) target = $region29
    $region28: #{tpu_custom_call.1} parent=1 // pred_region
      %s88 = ssub.s32 16, 16
      %89 = vsyncadd [#allocation12], %s88
      %s91 = sshll.u32 [#allocation13], 4
      %s92 = int_to_ptr.vmem [resolvable:$true] %s91
      %94 = dma.hbm_to_vmem [thread:$0]  %s6, 16, %s92, [#allocation12]
    $region29: #{tpu_custom_call.1} parent=1 // pred_fallthru
      _
    // Predicated region
    $region30: #{tpu_custom_call.1} parent=1 // pred_check
      _
    $region31: #{tpu_custom_call.1} parent=1 // pred_check_branch
      %96 = sbr.rel (0) target = $region33
    $region32: #{tpu_custom_call.1} parent=1 // pred_region
      %97 = dma.done [#allocation3], 128
    $region33: #{tpu_custom_call.1} parent=1 // pred_fallthru
      _
    // Predicated region
    $region34: #{tpu_custom_call.1} parent=1 // pred_check
      _
    $region35: #{tpu_custom_call.1} parent=1 // pred_check_branch
      %99 = sbr.rel (0) target = $region37
    $region36: #{tpu_custom_call.1} parent=1 // pred_region
      %100 = dma.done [#allocation6], 1024
    $region37: #{tpu_custom_call.1} parent=1 // pred_fallthru
      _
    // Predicated region
    $region38: #{tpu_custom_call.1} parent=1 // pred_check
      _
    $region39: #{tpu_custom_call.1} parent=1 // pred_check_branch
      %102 = sbr.rel (0) target = $region41
    $region40: #{tpu_custom_call.1} parent=1 // pred_region
      %103 = dma.done [#allocation6], 128
    $region41: #{tpu_custom_call.1} parent=1 // pred_fallthru
      _
    // Predicated region
    $region42: #{tpu_custom_call.1} parent=1 // pred_check
      _
    $region43: #{tpu_custom_call.1} parent=1 // pred_check_branch
      %105 = sbr.rel (0) target = $region45
    $region44: #{tpu_custom_call.1} parent=1 // pred_region
      %106 = dma.done [#allocation9], 512
    $region45: #{tpu_custom_call.1} parent=1 // pred_fallthru
      _
    // Predicated region
    $region46: #{tpu_custom_call.1} parent=1 // pred_check
      _
    $region47: #{tpu_custom_call.1} parent=1 // pred_check_branch
      %108 = sbr.rel (0) target = $region49
    $region48: #{tpu_custom_call.1} parent=1 // pred_region
      %109 = dma.done [#allocation9], 512
    $region49: #{tpu_custom_call.1} parent=1 // pred_fallthru
      _
    // Predicated region
    $region50: #{tpu_custom_call.1} parent=1 // pred_check
      _
    $region51: #{tpu_custom_call.1} parent=1 // pred_check_branch
      %111 = sbr.rel (0) target = $region53
    $region52: #{tpu_custom_call.1} parent=1 // pred_region
      %112 = dma.done [#allocation12], 512
    $region53: #{tpu_custom_call.1} parent=1 // pred_fallthru
      _
    // Predicated region
    $region54: #{tpu_custom_call.1} parent=1 // pred_check
      _
    $region55: #{tpu_custom_call.1} parent=1 // pred_check_branch
      %114 = sbr.rel (0) target = $region57
    $region56: #{tpu_custom_call.1} parent=1 // pred_region
      %115 = dma.done [#allocation12], 16
    $region57: #{tpu_custom_call.1} parent=1 // pred_fallthru
      _
    %v116 = vld [vmem:[#allocation2] sm:$0xff]
    %v117 = vld [vmem:[#allocation5] sm:$0xff]
    %v118 = vld [vmem:[#allocation5 + $0x8] sm:$0xff]
    %v119 = vld [vmem:[#allocation5 + $0x10] sm:$0xff]
    %v120 = vld [vmem:[#allocation5 + $0x18] sm:$0xff]
    %v121 = vld [vmem:[#allocation5 + $0x20] sm:$0xff]
    %v122 = vld [vmem:[#allocation5 + $0x28] sm:$0xff]
    %v123 = vld [vmem:[#allocation5 + $0x30] sm:$0xff]
    %v124 = vld [vmem:[#allocation5 + $0x38] sm:$0xff]
    %v125 = vld [vmem:[#allocation8] sm:$0xff]
    %v126 = vld [vmem:[#allocation8 + $0x8] sm:$0xff]
    %v127 = vld [vmem:[#allocation8 + $0x10] sm:$0xff]
    %v128 = vld [vmem:[#allocation8 + $0x18] sm:$0xff]
    %vm129 = vcmask 261120
    %v131 = vsel %vm129, %v116, 0
    %133 = vmatprep.subr.mxu0 0.0
    %134 = vmatpush1.msra.mxu0 %v125
    %135 = vmatprep.subr.mxu0 0.0
    %136 = vmatpush1.msra.mxu0 %v126
    %137 = vmatprep.subr.mxu0 0.0
    %138 = vmatpush1.msra.mxu0 %v127
    %139 = vmatprep.subr.mxu0 0.0
    %140 = vmatpush1.msra.mxu0 %v128
    %141 = vmatprep.subr.mxu0 0.0
    %142 = vmatpush1.msra.mxu0 0.0
    %143 = vmatprep.subr.mxu0 0.0
    %144 = vmatpush1.msra.mxu0 0.0
    %145 = vmatprep.subr.mxu0 0.0
    %146 = vmatpush1.msra.mxu0 0.0
    %147 = vmatprep.subr.mxu0 0.0
    %148 = vmatpush1.msra.mxu0 0.0
    %149 = vmatprep.subr.mxu0 0.0
    %150 = vmatpush1.msra.mxu0 0.0
    %151 = vmatprep.subr.mxu0 0.0
    %152 = vmatpush1.msra.mxu0 0.0
    %153 = vmatprep.subr.mxu0 0.0
    %154 = vmatpush1.msra.mxu0 0.0
    %155 = vmatprep.subr.mxu0 0.0
    %156 = vmatpush1.msra.mxu0 0.0
    %157 = vmatprep.subr.mxu0 0.0
    %158 = vmatpush1.msra.mxu0 0.0
    %159 = vmatprep.subr.mxu0 0.0
    %160 = vmatpush1.msra.mxu0 0.0
    %161 = vmatprep.subr.mxu0 0.0
    %162 = vmatpush1.msra.mxu0 0.0
    %163 = vmatprep.subr.mxu0 0.0
    %164 = vmatpush1.msra.mxu0 0.0
    %165 = vmatprep.subr.mxu0 0.0
    %166 = vmatpush1.msra.mxu0 0.0
    %167 = vmatprep.subr.mxu0 0.0
    %168 = vmatpush1.msra.mxu0 0.0
    %169 = vmatprep.subr.mxu0 0.0
    %170 = vmatpush1.msra.mxu0 0.0
    %171 = vmatprep.subr.mxu0 0.0
    %172 = vmatpush1.msra.mxu0 0.0
    %173 = vmatprep.subr.mxu0 0.0
    %174 = vmatpush1.msra.mxu0 0.0
    %175 = vmatprep.subr.mxu0 0.0
    %176 = vmatpush1.msra.mxu0 0.0
    %177 = vmatprep.subr.mxu0 0.0
    %178 = vmatpush1.msra.mxu0 0.0
    %179 = vmatprep.subr.mxu0 0.0
    %180 = vmatpush1.msra.mxu0 0.0
    %181 = vmatprep.subr.mxu0 0.0
    %182 = vmatpush1.msra.mxu0 0.0
    %183 = vmatprep.subr.mxu0 0.0
    %184 = vmatpush1.msra.mxu0 0.0
    %185 = vmatprep.subr.mxu0 0.0
    %186 = vmatpush1.msra.mxu0 0.0
    %187 = vmatprep.subr.mxu0 0.0
    %188 = vmatpush1.msra.mxu0 0.0
    %189 = vmatprep.subr.mxu0 0.0
    %190 = vmatpush1.msra.mxu0 0.0
    %191 = vmatprep.subr.mxu0 0.0
    %192 = vmatpush1.msra.mxu0 0.0
    %193 = vmatprep.subr.mxu0 0.0
    %194 = vmatpush1.msra.mxu0 0.0
    %195 = vmatprep.subr.mxu0 0.0
    %196 = vmatpush1.msra.mxu0 0.0
    %197 = vmatprep.mubr.f32.mxu0 0.0
    %198 = vmatmul.mubr.f32.gmra.mrb[0].mxu0 %v131
    %v199 = vpop.f32.mrb[0].mxu0
    %v200 = vadd.f32 0.0, %v199
    %v201 = vpop.f32.mrb[0].mxu0
    %202 = vdwg.mxu0
    %v204 = vcombine.high %v200, %v200
    %v206 = vunpack.c.l.s4 1966171168
    %v207 = vunpack.c.0.s8 %v206
    %v208 = vlaneseq
    %v209 = vshrl.u32 %v208, 7
    %v210 = vsub.s32 %v207, %v209
    %v211 = vrot.slane %v200, %v210
    %v213 = vunpack.c.l.s4 1966171168
    %v214 = vunpack.c.0.s8 %v213
    %v215 = vlaneseq
    %v216 = vshrl.u32 %v215, 7
    %v217 = vsub.s32 %v214, %v216
    %v218 = vrot.slane %v204, %v217
    %v219 = vcombine.high %v211, %v211
    %v220 = vcombine.high %v218, %v218
    %v222 = vunpack.c.l.s4 1966171168
    %v223 = vunpack.c.0.s8 %v222
    %v224 = vlaneseq
    %v225 = vshrl.u32 %v224, 7
    %v226 = vsub.s32 %v223, %v225
    %v227 = vrot.slane %v211, %v226
    %v229 = vunpack.c.l.s4 1966171168
    %v230 = vunpack.c.0.s8 %v229
    %v231 = vlaneseq
    %v232 = vshrl.u32 %v231, 7
    %v233 = vsub.s32 %v230, %v232
    %v234 = vrot.slane %v218, %v233
    %v236 = vunpack.c.l.s4 1966171168
    %v237 = vunpack.c.0.s8 %v236
    %v238 = vlaneseq
    %v239 = vshrl.u32 %v238, 7
    %v240 = vsub.s32 %v237, %v239
    %v241 = vrot.slane %v219, %v240
    %v243 = vunpack.c.l.s4 1966171168
    %v244 = vunpack.c.0.s8 %v243
    %v245 = vlaneseq
    %v246 = vshrl.u32 %v245, 7
    %v247 = vsub.s32 %v244, %v246
    %v248 = vrot.slane %v220, %v247
    %v249 = vcombine.high %v227, %v227
    %v250 = vcombine.high %v234, %v234
    %v251 = vcombine.high %v241, %v241
    %v252 = vcombine.high %v248, %v248
    %v253 = vlaneseq
    %v254 = vshrl.u32 %v253, 7
    %v255 = vsub.s32 0, %v254
    %v256 = vrot.slane %v227, %v255
    %v257 = vlaneseq
    %v258 = vshrl.u32 %v257, 7
    %v259 = vsub.s32 0, %v258
    %v260 = vrot.slane %v241, %v259
    %v261 = vlaneseq
    %v262 = vshrl.u32 %v261, 7
    %v263 = vsub.s32 0, %v262
    %v264 = vrot.slane %v249, %v263
    %v265 = vlaneseq
    %v266 = vshrl.u32 %v265, 7
    %v267 = vsub.s32 0, %v266
    %v268 = vrot.slane %v251, %v267
    %v269 = vlaneseq
    %v270 = vshrl.u32 %v269, 7
    %v271 = vsub.s32 0, %v270
    %v272 = vrot.slane %v234, %v271
    %v273 = vlaneseq
    %v274 = vshrl.u32 %v273, 7
    %v275 = vsub.s32 0, %v274
    %v276 = vrot.slane %v248, %v275
    %v277 = vlaneseq
    %v278 = vshrl.u32 %v277, 7
    %v279 = vsub.s32 0, %v278
    %v280 = vrot.slane %v250, %v279
    %v281 = vlaneseq
    %v282 = vshrl.u32 %v281, 7
    %v283 = vsub.s32 0, %v282
    %v284 = vrot.slane %v252, %v283
    %v293 = vmul.f32 %v117, %v256
    %v294 = vmul.f32 %v118, %v260
    %v295 = vmul.f32 %v119, %v264
    %v296 = vmul.f32 %v120, %v268
    %v297 = vmul.f32 %v121, %v272
    %v298 = vmul.f32 %v122, %v276
    %v299 = vmul.f32 %v123, %v280
    %v300 = vmul.f32 %v124, %v284
    %v301 = vsel %vm129, %v293, 0.0
    %302 = vadd.xlane.f32.xlu0 %v301
    %v303 = vpop.xlane.xlu0 %302
    %v304 = vsel %vm129, %v294, 0.0
    %305 = vadd.xlane.f32.xlu0 %v304
    %v306 = vpop.xlane.xlu0 %305
    %v307 = vsel %vm129, %v295, 0.0
    %308 = vadd.xlane.f32.xlu0 %v307
    %v309 = vpop.xlane.xlu0 %308
    %v310 = vsel %vm129, %v296, 0.0
    %311 = vadd.xlane.f32.xlu0 %v310
    %v312 = vpop.xlane.xlu0 %311
    %v313 = vsel %vm129, %v297, 0.0
    %314 = vadd.xlane.f32.xlu0 %v313
    %v315 = vpop.xlane.xlu0 %314
    %v316 = vsel %vm129, %v298, 0.0
    %317 = vadd.xlane.f32.xlu0 %v316
    %v318 = vpop.xlane.xlu0 %317
    %v319 = vsel %vm129, %v299, 0.0
    %320 = vadd.xlane.f32.xlu0 %v319
    %v321 = vpop.xlane.xlu0 %320
    %v322 = vsel %vm129, %v300, 0.0
    %323 = vadd.xlane.f32.xlu0 %v322
    %v324 = vpop.xlane.xlu0 %323
    %v325 = vld [vmem:[#allocation7] sm:$0xff]
    %v327 = vlaneseq
    %v328 = vshrl.u32 %v327, 7
    %v329 = vsub.s32 0, %v328
    %v330 = vrot.slane %v325, %v329
    %332 = vbcast.lane.b32.xlu0 %v330, 256
    %v333 = vpop.permute.xlu0 %332
    %v334 = vlaneseq
    %v335 = vshrl.u32 %v334, 7
    %v336 = vsub.s32 1, %v335
    %v337 = vrot.slane %v325, %v336
    %339 = vbcast.lane.b32.xlu0 %v337, 256
    %v340 = vpop.permute.xlu0 %339
    %v341 = vlaneseq
    %v342 = vshrl.u32 %v341, 7
    %v343 = vsub.s32 2, %v342
    %v344 = vrot.slane %v325, %v343
    %346 = vbcast.lane.b32.xlu0 %v344, 256
    %v347 = vpop.permute.xlu0 %346
    %v348 = vlaneseq
    %v349 = vshrl.u32 %v348, 7
    %v350 = vsub.s32 3, %v349
    %v351 = vrot.slane %v325, %v350
    %353 = vbcast.lane.b32.xlu0 %v351, 256
    %v354 = vpop.permute.xlu0 %353
    %v355 = vlaneseq
    %v356 = vshrl.u32 %v355, 7
    %v357 = vsub.s32 4, %v356
    %v358 = vrot.slane %v325, %v357
    %360 = vbcast.lane.b32.xlu0 %v358, 256
    %v361 = vpop.permute.xlu0 %360
    %v362 = vlaneseq
    %v363 = vshrl.u32 %v362, 7
    %v364 = vsub.s32 5, %v363
    %v365 = vrot.slane %v325, %v364
    %367 = vbcast.lane.b32.xlu0 %v365, 256
    %v368 = vpop.permute.xlu0 %367
    %v369 = vlaneseq
    %v370 = vshrl.u32 %v369, 7
    %v371 = vsub.s32 6, %v370
    %v372 = vrot.slane %v325, %v371
    %374 = vbcast.lane.b32.xlu0 %v372, 256
    %v375 = vpop.permute.xlu0 %374
    %v376 = vlaneseq
    %v377 = vshrl.u32 %v376, 7
    %v378 = vsub.s32 7, %v377
    %v379 = vrot.slane %v325, %v378
    %381 = vbcast.lane.b32.xlu0 %v379, 256
    %v382 = vpop.permute.xlu0 %381
    %v391 = vadd.f32 %v303, %v333
    %v392 = vadd.f32 %v306, %v340
    %v393 = vadd.f32 %v309, %v347
    %v394 = vadd.f32 %v312, %v354
    %v395 = vadd.f32 %v315, %v361
    %v396 = vadd.f32 %v318, %v368
    %v397 = vadd.f32 %v321, %v375
    %v398 = vadd.f32 %v324, %v382
    %407 = vset.pattern.permute.xlu0 0
    %408 = vperm.xlu0 %407, %v391
    %v409 = vpop.permute.xlu0 %408
    %410 = vset.pattern.permute.xlu0 0
    %411 = vperm.xlu0 %410, %v392
    %v412 = vpop.permute.xlu0 %411
    %413 = vset.pattern.permute.xlu0 0
    %414 = vperm.xlu0 %413, %v393
    %v415 = vpop.permute.xlu0 %414
    %416 = vset.pattern.permute.xlu0 0
    %417 = vperm.xlu0 %416, %v394
    %v418 = vpop.permute.xlu0 %417
    %419 = vset.pattern.permute.xlu0 0
    %420 = vperm.xlu0 %419, %v395
    %v421 = vpop.permute.xlu0 %420
    %422 = vset.pattern.permute.xlu0 0
    %423 = vperm.xlu0 %422, %v396
    %v424 = vpop.permute.xlu0 %423
    %425 = vset.pattern.permute.xlu0 0
    %426 = vperm.xlu0 %425, %v397
    %v427 = vpop.permute.xlu0 %426
    %428 = vset.pattern.permute.xlu0 0
    %429 = vperm.xlu0 %428, %v398
    %v430 = vpop.permute.xlu0 %429
    %v431 = vlaneseq
    %v432 = vand.u32 %v431, 127
    %v433 = vlaneseq
    %v434 = vshrl.u32 %v433, 7
    %v435 = vsub.s32 %v432, %v434
    %v436 = vrot.slane %v409, %v435
    %v437 = vlaneseq
    %v438 = vshrl.u32 %v437, 7
    %v439 = vsub.s32 %v432, %v438
    %v440 = vrot.slane %v412, %v439
    %v441 = vlaneseq
    %v442 = vshrl.u32 %v441, 7
    %v443 = vsub.s32 %v432, %v442
    %v444 = vrot.slane %v415, %v443
    %v445 = vlaneseq
    %v446 = vshrl.u32 %v445, 7
    %v447 = vsub.s32 %v432, %v446
    %v448 = vrot.slane %v418, %v447
    %v449 = vlaneseq
    %v450 = vshrl.u32 %v449, 7
    %v451 = vsub.s32 %v432, %v450
    %v452 = vrot.slane %v421, %v451
    %v453 = vlaneseq
    %v454 = vshrl.u32 %v453, 7
    %v455 = vsub.s32 %v432, %v454
    %v456 = vrot.slane %v424, %v455
    %v457 = vlaneseq
    %v458 = vshrl.u32 %v457, 7
    %v459 = vsub.s32 %v432, %v458
    %v460 = vrot.slane %v427, %v459
    %v461 = vlaneseq
    %v462 = vshrl.u32 %v461, 7
    %v463 = vsub.s32 %v432, %v462
    %v464 = vrot.slane %v430, %v463
    %vm465 = vcmask 1041409
    %v466 = vsel %vm465, %v440, %v436
    %vm467 = vcmask 1042434
    %v468 = vsel %vm467, %v444, %v466
    %vm469 = vcmask 1043459
    %v470 = vsel %vm469, %v448, %v468
    %vm471 = vcmask 1044484
    %v472 = vsel %vm471, %v452, %v470
    %vm473 = vcmask 1045509
    %v474 = vsel %vm473, %v456, %v472
    %vm475 = vcmask 1046534
    %v476 = vsel %vm475, %v460, %v474
    %vm477 = vcmask 1047559
    %v478 = vsel %vm477, %v464, %v476
    %vm480 = vcmask 64512
    %v481 = vsel %vm480, %v478, -inf
    %482 = vmax.xlane.f32.xlu0 %v481
    %v483 = vpop.xlane.xlu0 %482
    %v485 = vlaneseq
    %v486 = vshrl.u32 %v485, 7
    %v487 = vsub.s32 0, %v486
    %v488 = vrot.slane %v483, %v487
    %v489 = vlaneseq
    %v490 = vshrl.u32 %v489, 7
    %v491 = vsub.s32 1, %v490
    %v492 = vrot.slane %v483, %v491
    %v493 = vlaneseq
    %v494 = vshrl.u32 %v493, 7
    %v495 = vsub.s32 2, %v494
    %v496 = vrot.slane %v483, %v495
    %v497 = vlaneseq
    %v498 = vshrl.u32 %v497, 7
    %v499 = vsub.s32 3, %v498
    %v500 = vrot.slane %v483, %v499
    %v501 = vlaneseq
    %v502 = vshrl.u32 %v501, 7
    %v503 = vsub.s32 4, %v502
    %v504 = vrot.slane %v483, %v503
    %v505 = vlaneseq
    %v506 = vshrl.u32 %v505, 7
    %v507 = vsub.s32 5, %v506
    %v508 = vrot.slane %v483, %v507
    %v509 = vlaneseq
    %v510 = vshrl.u32 %v509, 7
    %v511 = vsub.s32 6, %v510
    %v512 = vrot.slane %v483, %v511
    %v513 = vlaneseq
    %v514 = vshrl.u32 %v513, 7
    %v515 = vsub.s32 7, %v514
    %v516 = vrot.slane %v483, %v515
    %v525 = vsub.f32 %v391, %v488
    %v526 = vsub.f32 %v392, %v492
    %v527 = vsub.f32 %v393, %v496
    %v528 = vsub.f32 %v394, %v500
    %v529 = vsub.f32 %v395, %v504
    %v530 = vsub.f32 %v396, %v508
    %v531 = vsub.f32 %v397, %v512
    %v532 = vsub.f32 %v398, %v516
    %v533 = vmul.f32 %v525, 1.442695
    %v534 = vpow.pop %v533
    %v535 = vmul.f32 %v526, 1.442695
    %v536 = vpow.pop %v535
    %v537 = vmul.f32 %v527, 1.442695
    %v538 = vpow.pop %v537
    %v539 = vmul.f32 %v528, 1.442695
    %v540 = vpow.pop %v539
    %v541 = vmul.f32 %v529, 1.442695
    %v542 = vpow.pop %v541
    %v543 = vmul.f32 %v530, 1.442695
    %v544 = vpow.pop %v543
    %v545 = vmul.f32 %v531, 1.442695
    %v546 = vpow.pop %v545
    %v547 = vmul.f32 %v532, 1.442695
    %v548 = vpow.pop %v547
    %557 = vset.pattern.permute.xlu0 0
    %558 = vperm.xlu0 %557, %v534
    %v559 = vpop.permute.xlu0 %558
    %560 = vset.pattern.permute.xlu0 0
    %561 = vperm.xlu0 %560, %v536
    %v562 = vpop.permute.xlu0 %561
    %563 = vset.pattern.permute.xlu0 0
    %564 = vperm.xlu0 %563, %v538
    %v565 = vpop.permute.xlu0 %564
    %566 = vset.pattern.permute.xlu0 0
    %567 = vperm.xlu0 %566, %v540
    %v568 = vpop.permute.xlu0 %567
    %569 = vset.pattern.permute.xlu0 0
    %570 = vperm.xlu0 %569, %v542
    %v571 = vpop.permute.xlu0 %570
    %572 = vset.pattern.permute.xlu0 0
    %573 = vperm.xlu0 %572, %v544
    %v574 = vpop.permute.xlu0 %573
    %575 = vset.pattern.permute.xlu0 0
    %576 = vperm.xlu0 %575, %v546
    %v577 = vpop.permute.xlu0 %576
    %578 = vset.pattern.permute.xlu0 0
    %579 = vperm.xlu0 %578, %v548
    %v580 = vpop.permute.xlu0 %579
    %v581 = vlaneseq
    %v582 = vshrl.u32 %v581, 7
    %v583 = vsub.s32 %v432, %v582
    %v584 = vrot.slane %v559, %v583
    %v585 = vlaneseq
    %v586 = vshrl.u32 %v585, 7
    %v587 = vsub.s32 %v432, %v586
    %v588 = vrot.slane %v562, %v587
    %v589 = vlaneseq
    %v590 = vshrl.u32 %v589, 7
    %v591 = vsub.s32 %v432, %v590
    %v592 = vrot.slane %v565, %v591
    %v593 = vlaneseq
    %v594 = vshrl.u32 %v593, 7
    %v595 = vsub.s32 %v432, %v594
    %v596 = vrot.slane %v568, %v595
    %v597 = vlaneseq
    %v598 = vshrl.u32 %v597, 7
    %v599 = vsub.s32 %v432, %v598
    %v600 = vrot.slane %v571, %v599
    %v601 = vlaneseq
    %v602 = vshrl.u32 %v601, 7
    %v603 = vsub.s32 %v432, %v602
    %v604 = vrot.slane %v574, %v603
    %v605 = vlaneseq
    %v606 = vshrl.u32 %v605, 7
    %v607 = vsub.s32 %v432, %v606
    %v608 = vrot.slane %v577, %v607
    %v609 = vlaneseq
    %v610 = vshrl.u32 %v609, 7
    %v611 = vsub.s32 %v432, %v610
    %v612 = vrot.slane %v580, %v611
    %v613 = vsel %vm465, %v588, %v584
    %v614 = vsel %vm467, %v592, %v613
    %v615 = vsel %vm469, %v596, %v614
    %v616 = vsel %vm471, %v600, %v615
    %v617 = vsel %vm473, %v604, %v616
    %v618 = vsel %vm475, %v608, %v617
    %v619 = vsel %vm477, %v612, %v618
    %v621 = vsel %vm480, %v619, 0.0
    %622 = vadd.xlane.f32.xlu0 %v621
    %v623 = vpop.xlane.xlu0 %622
    %v624 = vrcp.pop %v623
    %v626 = vlaneseq
    %v627 = vshrl.u32 %v626, 7
    %v628 = vsub.s32 0, %v627
    %v629 = vrot.slane %v624, %v628
    %v630 = vlaneseq
    %v631 = vshrl.u32 %v630, 7
    %v632 = vsub.s32 1, %v631
    %v633 = vrot.slane %v624, %v632
    %v634 = vlaneseq
    %v635 = vshrl.u32 %v634, 7
    %v636 = vsub.s32 2, %v635
    %v637 = vrot.slane %v624, %v636
    %v638 = vlaneseq
    %v639 = vshrl.u32 %v638, 7
    %v640 = vsub.s32 3, %v639
    %v641 = vrot.slane %v624, %v640
    %v642 = vlaneseq
    %v643 = vshrl.u32 %v642, 7
    %v644 = vsub.s32 4, %v643
    %v645 = vrot.slane %v624, %v644
    %v646 = vlaneseq
    %v647 = vshrl.u32 %v646, 7
    %v648 = vsub.s32 5, %v647
    %v649 = vrot.slane %v624, %v648
    %v650 = vlaneseq
    %v651 = vshrl.u32 %v650, 7
    %v652 = vsub.s32 6, %v651
    %v653 = vrot.slane %v624, %v652
    %v654 = vlaneseq
    %v655 = vshrl.u32 %v654, 7
    %v656 = vsub.s32 7, %v655
    %v657 = vrot.slane %v624, %v656
    %v666 = vmul.f32 %v534, %v629
    %v667 = vmul.f32 %v536, %v633
    %v668 = vmul.f32 %v538, %v637
    %v669 = vmul.f32 %v540, %v641
    %v670 = vmul.f32 %v542, %v645
    %v671 = vmul.f32 %v544, %v649
    %v672 = vmul.f32 %v546, %v653
    %v673 = vmul.f32 %v548, %v657
    %675 = vset.pattern.permute.xlu0 0
    %676 = vperm.xlu0 %675, %v666
    %v677 = vpop.permute.xlu0 %676
    %680 = vset.pattern.permute.xlu0 0
    %681 = vperm.xlu0 %680, %v667
    %v682 = vpop.permute.xlu0 %681
    %685 = vset.pattern.permute.xlu0 0
    %686 = vperm.xlu0 %685, %v668
    %v687 = vpop.permute.xlu0 %686
    %690 = vset.pattern.permute.xlu0 0
    %691 = vperm.xlu0 %690, %v669
    %v692 = vpop.permute.xlu0 %691
    %695 = vset.pattern.permute.xlu0 0
    %696 = vperm.xlu0 %695, %v670
    %v697 = vpop.permute.xlu0 %696
    %700 = vset.pattern.permute.xlu0 0
    %701 = vperm.xlu0 %700, %v671
    %v702 = vpop.permute.xlu0 %701
    %705 = vset.pattern.permute.xlu0 0
    %706 = vperm.xlu0 %705, %v672
    %v707 = vpop.permute.xlu0 %706
    %710 = vset.pattern.permute.xlu0 0
    %711 = vperm.xlu0 %710, %v673
    %v712 = vpop.permute.xlu0 %711
    %v714 = vmul.f32 %v677, %v117
    %v715 = vmul.f32 %v682, %v118
    %v716 = vmul.f32 %v687, %v119
    %v717 = vmul.f32 %v692, %v120
    %v718 = vmul.f32 %v697, %v121
    %v719 = vmul.f32 %v702, %v122
    %v720 = vmul.f32 %v707, %v123
    %v721 = vmul.f32 %v712, %v124
    %v722 = vsel %vm129, %v714, 0.0
    %v723 = vrot.slane %v722, 4
    %v724 = vadd.f32 %v722, %v723
    %v725 = vrot.slane %v724, 2
    %v726 = vadd.f32 %v724, %v725
    %v727 = vrot.slane %v726, 1
    %v728 = vadd.f32 %v726, %v727
    %v729 = vsel %vm129, %v715, 0.0
    %v730 = vrot.slane %v729, 4
    %v731 = vadd.f32 %v729, %v730
    %v732 = vrot.slane %v731, 2
    %v733 = vadd.f32 %v731, %v732
    %v734 = vrot.slane %v733, 1
    %v735 = vadd.f32 %v733, %v734
    %v736 = vsel %vm129, %v716, 0.0
    %v737 = vrot.slane %v736, 4
    %v738 = vadd.f32 %v736, %v737
    %v739 = vrot.slane %v738, 2
    %v740 = vadd.f32 %v738, %v739
    %v741 = vrot.slane %v740, 1
    %v742 = vadd.f32 %v740, %v741
    %v743 = vsel %vm129, %v717, 0.0
    %v744 = vrot.slane %v743, 4
    %v745 = vadd.f32 %v743, %v744
    %v746 = vrot.slane %v745, 2
    %v747 = vadd.f32 %v745, %v746
    %v748 = vrot.slane %v747, 1
    %v749 = vadd.f32 %v747, %v748
    %v750 = vsel %vm129, %v718, 0.0
    %v751 = vrot.slane %v750, 4
    %v752 = vadd.f32 %v750, %v751
    %v753 = vrot.slane %v752, 2
    %v754 = vadd.f32 %v752, %v753
    %v755 = vrot.slane %v754, 1
    %v756 = vadd.f32 %v754, %v755
    %v757 = vsel %vm129, %v719, 0.0
    %v758 = vrot.slane %v757, 4
    %v759 = vadd.f32 %v757, %v758
    %v760 = vrot.slane %v759, 2
    %v761 = vadd.f32 %v759, %v760
    %v762 = vrot.slane %v761, 1
    %v763 = vadd.f32 %v761, %v762
    %v764 = vsel %vm129, %v720, 0.0
    %v765 = vrot.slane %v764, 4
    %v766 = vadd.f32 %v764, %v765
    %v767 = vrot.slane %v766, 2
    %v768 = vadd.f32 %v766, %v767
    %v769 = vrot.slane %v768, 1
    %v770 = vadd.f32 %v768, %v769
    %v771 = vsel %vm129, %v721, 0.0
    %v772 = vrot.slane %v771, 4
    %v773 = vadd.f32 %v771, %v772
    %v774 = vrot.slane %v773, 2
    %v775 = vadd.f32 %v773, %v774
    %v776 = vrot.slane %v775, 1
    %v777 = vadd.f32 %v775, %v776
    %v778 = vld [vmem:[#allocation10] sm:$0xff]
    %v779 = vld [vmem:[#allocation10 + $0x8] sm:$0xff]
    %v780 = vld [vmem:[#allocation10 + $0x10] sm:$0xff]
    %v781 = vld [vmem:[#allocation10 + $0x18] sm:$0xff]
    %v782 = vld [vmem:[#allocation11] sm:$0xff]
    %v783 = vld [vmem:[#allocation11 + $0x8] sm:$0xff]
    %v784 = vld [vmem:[#allocation11 + $0x10] sm:$0xff]
    %v785 = vld [vmem:[#allocation11 + $0x18] sm:$0xff]
    %786 = vmatprep.subr.mxu0 0.0
    %787 = vmatpush1.msra.mxu0 %v782
    %788 = vmatprep.subr.mxu0 0.0
    %789 = vmatpush1.msra.mxu0 %v783
    %790 = vmatprep.subr.mxu0 0.0
    %791 = vmatpush1.msra.mxu0 %v784
    %792 = vmatprep.subr.mxu0 0.0
    %793 = vmatpush1.msra.mxu0 %v785
    %794 = vmatprep.subr.mxu0 0.0
    %795 = vmatpush1.msra.mxu0 0.0
    %796 = vmatprep.subr.mxu0 0.0
    %797 = vmatpush1.msra.mxu0 0.0
    %798 = vmatprep.subr.mxu0 0.0
    %799 = vmatpush1.msra.mxu0 0.0
    %800 = vmatprep.subr.mxu0 0.0
    %801 = vmatpush1.msra.mxu0 0.0
    %802 = vmatprep.subr.mxu0 0.0
    %803 = vmatpush1.msra.mxu0 0.0
    %804 = vmatprep.subr.mxu0 0.0
    %805 = vmatpush1.msra.mxu0 0.0
    %806 = vmatprep.subr.mxu0 0.0
    %807 = vmatpush1.msra.mxu0 0.0
    %808 = vmatprep.subr.mxu0 0.0
    %809 = vmatpush1.msra.mxu0 0.0
    %810 = vmatprep.subr.mxu0 0.0
    %811 = vmatpush1.msra.mxu0 0.0
    %812 = vmatprep.subr.mxu0 0.0
    %813 = vmatpush1.msra.mxu0 0.0
    %814 = vmatprep.subr.mxu0 0.0
    %815 = vmatpush1.msra.mxu0 0.0
    %816 = vmatprep.subr.mxu0 0.0
    %817 = vmatpush1.msra.mxu0 0.0
    %818 = vmatprep.subr.mxu0 0.0
    %819 = vmatpush1.msra.mxu0 0.0
    %820 = vmatprep.subr.mxu0 0.0
    %821 = vmatpush1.msra.mxu0 0.0
    %822 = vmatprep.subr.mxu0 0.0
    %823 = vmatpush1.msra.mxu0 0.0
    %824 = vmatprep.subr.mxu0 0.0
    %825 = vmatpush1.msra.mxu0 0.0
    %826 = vmatprep.subr.mxu0 0.0
    %827 = vmatpush1.msra.mxu0 0.0
    %828 = vmatprep.subr.mxu0 0.0
    %829 = vmatpush1.msra.mxu0 0.0
    %830 = vmatprep.subr.mxu0 0.0
    %831 = vmatpush1.msra.mxu0 0.0
    %832 = vmatprep.subr.mxu0 0.0
    %833 = vmatpush1.msra.mxu0 0.0
    %834 = vmatprep.subr.mxu0 0.0
    %835 = vmatpush1.msra.mxu0 0.0
    %836 = vmatprep.subr.mxu0 0.0
    %837 = vmatpush1.msra.mxu0 0.0
    %838 = vmatprep.subr.mxu0 0.0
    %839 = vmatpush1.msra.mxu0 0.0
    %840 = vmatprep.subr.mxu0 0.0
    %841 = vmatpush1.msra.mxu0 0.0
    %842 = vmatprep.subr.mxu0 0.0
    %843 = vmatpush1.msra.mxu0 0.0
    %844 = vmatprep.subr.mxu0 0.0
    %845 = vmatpush1.msra.mxu0 0.0
    %846 = vmatprep.subr.mxu0 0.0
    %847 = vmatpush1.msra.mxu0 0.0
    %848 = vmatprep.subr.mxu0 0.0
    %849 = vmatpush1.msra.mxu0 0.0
    %850 = vmatprep.mubr.f32.mxu0 0.0
    %851 = vmatmul.mubr.f32.gmra.mrb[0].mxu0 %v131
    %v852 = vpop.f32.mrb[0].mxu0
    %v853 = vadd.f32 0.0, %v852
    %v854 = vpop.f32.mrb[0].mxu0
    %855 = vdwg.mxu0
    %v864 = vsel %vm465, %v735, %v728
    %v865 = vsel %vm467, %v742, %v864
    %v866 = vsel %vm469, %v749, %v865
    %v867 = vsel %vm471, %v756, %v866
    %v868 = vsel %vm473, %v763, %v867
    %v869 = vsel %vm475, %v770, %v868
    %v870 = vsel %vm477, %v777, %v869
    %v871 = vsel %vm129, %v870, 0
    %873 = vmatprep.subr.mxu0 0.0
    %874 = vmatpush1.msra.mxu0 %v778
    %875 = vmatprep.subr.mxu0 0.0
    %876 = vmatpush1.msra.mxu0 %v779
    %877 = vmatprep.subr.mxu0 0.0
    %878 = vmatpush1.msra.mxu0 %v780
    %879 = vmatprep.subr.mxu0 0.0
    %880 = vmatpush1.msra.mxu0 %v781
    %881 = vmatprep.subr.mxu0 0.0
    %882 = vmatpush1.msra.mxu0 0.0
    %883 = vmatprep.subr.mxu0 0.0
    %884 = vmatpush1.msra.mxu0 0.0
    %885 = vmatprep.subr.mxu0 0.0
    %886 = vmatpush1.msra.mxu0 0.0
    %887 = vmatprep.subr.mxu0 0.0
    %888 = vmatpush1.msra.mxu0 0.0
    %889 = vmatprep.subr.mxu0 0.0
    %890 = vmatpush1.msra.mxu0 0.0
    %891 = vmatprep.subr.mxu0 0.0
    %892 = vmatpush1.msra.mxu0 0.0
    %893 = vmatprep.subr.mxu0 0.0
    %894 = vmatpush1.msra.mxu0 0.0
    %895 = vmatprep.subr.mxu0 0.0
    %896 = vmatpush1.msra.mxu0 0.0
    %897 = vmatprep.subr.mxu0 0.0
    %898 = vmatpush1.msra.mxu0 0.0
    %899 = vmatprep.subr.mxu0 0.0
    %900 = vmatpush1.msra.mxu0 0.0
    %901 = vmatprep.subr.mxu0 0.0
    %902 = vmatpush1.msra.mxu0 0.0
    %903 = vmatprep.subr.mxu0 0.0
    %904 = vmatpush1.msra.mxu0 0.0
    %905 = vmatprep.subr.mxu0 0.0
    %906 = vmatpush1.msra.mxu0 0.0
    %907 = vmatprep.subr.mxu0 0.0
    %908 = vmatpush1.msra.mxu0 0.0
    %909 = vmatprep.subr.mxu0 0.0
    %910 = vmatpush1.msra.mxu0 0.0
    %911 = vmatprep.subr.mxu0 0.0
    %912 = vmatpush1.msra.mxu0 0.0
    %913 = vmatprep.subr.mxu0 0.0
    %914 = vmatpush1.msra.mxu0 0.0
    %915 = vmatprep.subr.mxu0 0.0
    %916 = vmatpush1.msra.mxu0 0.0
    %917 = vmatprep.subr.mxu0 0.0
    %918 = vmatpush1.msra.mxu0 0.0
    %919 = vmatprep.subr.mxu0 0.0
    %920 = vmatpush1.msra.mxu0 0.0
    %921 = vmatprep.subr.mxu0 0.0
    %922 = vmatpush1.msra.mxu0 0.0
    %923 = vmatprep.subr.mxu0 0.0
    %924 = vmatpush1.msra.mxu0 0.0
    %925 = vmatprep.subr.mxu0 0.0
    %926 = vmatpush1.msra.mxu0 0.0
    %927 = vmatprep.subr.mxu0 0.0
    %928 = vmatpush1.msra.mxu0 0.0
    %929 = vmatprep.subr.mxu0 0.0
    %930 = vmatpush1.msra.mxu0 0.0
    %931 = vmatprep.subr.mxu0 0.0
    %932 = vmatpush1.msra.mxu0 0.0
    %933 = vmatprep.subr.mxu0 0.0
    %934 = vmatpush1.msra.mxu0 0.0
    %935 = vmatprep.subr.mxu0 0.0
    %936 = vmatpush1.msra.mxu0 0.0
    %937 = vmatprep.mubr.f32.mxu0 0.0
    %938 = vmatmul.mubr.f32.gmra.mrb[0].mxu0 %v871
    %v939 = vpop.f32.mrb[0].mxu0
    %v940 = vadd.f32 %v853, %v939
    %v941 = vpop.f32.mrb[0].mxu0
    %942 = vdwg.mxu0
    %v943 = vld [vmem:[#allocation13] sm:$0x1]
    %v945 = vlaneseq
    %v946 = vshrl.u32 %v945, 7
    %v947 = vsub.s32 0, %v946
    %v948 = vrot.slane %v943, %v947
    %v950 = vadd.f32 %v940, %v948
    %v951 = vtanh.pop %v950
    %952 = vst.msk [vmem:[#allocation14] sm:$0xff] %vm129, %v951
    // Predicated region
    $region58: #{tpu_custom_call.1} parent=1 // pred_check
      _
    $region59: #{tpu_custom_call.1} parent=1 // pred_check_branch
      %954 = sbr.rel (0) target = $region61
    $region60: #{tpu_custom_call.1} parent=1 // pred_region
      %s956 = ssub.s32 128, 128
      %957 = vsyncadd [#allocation4], %s956
      %s959 = sshll.u32 [#allocation14], 4
      %s960 = int_to_ptr.vmem [resolvable:$true] %s959
      %962 = dma.vmem_to_hbm [thread:$0]  %s960, 128, %s7, [#allocation4]
    $region61: #{tpu_custom_call.1} parent=1 // pred_fallthru
      _
    // Predicated region
    $region62: #{tpu_custom_call.1} parent=1 // pred_check
      _
    $region63: #{tpu_custom_call.1} parent=1 // pred_check_branch
      %964 = sbr.rel (0) target = $region65
    $region64: #{tpu_custom_call.1} parent=1 // pred_region
      %965 = dma.done [#allocation4], 128
    $region65: #{tpu_custom_call.1} parent=1 // pred_fallthru
      _
    %966 = vsyncpa [#allocation3], 1
    %967 = vsyncpa [#allocation6], 1
    %968 = vsyncpa [#allocation9], 1
    %969 = vsyncpa [#allocation12], 1
    %970 = vsyncpa [#allocation4], 1

</llo_original>
